<compile_context>
chip_gen: v7x
topology: tpu7x:2x2x1
jax: 0.10.0
libtpu: 0.0.40
codegen_flags: <defaults>
</compile_context>

<pallas_src>
import jax
import jax.numpy as jnp
from jax import lax
from jax.experimental import pallas as pl
from jax.experimental.pallas import tpu as pltpu


def _round_up(x, m):
    return (x + m - 1) // m * m


def _make_kernel(MT, TMT, mask_needed):
    """Build the kernel closure for fixed (MT, TMT, mask_needed)."""

    def kernel(x_ref, w1_ref, b1_ref, w2_ref, b2_ref, o_ref, pooled_ref):
        # x_ref : (TN, TMT, K)   activations, K on lanes (unpadded)
        # w1_ref: (K, Hp)        fc1 weight, 1/(M*T) + BN scale folded in
        # b1_ref: (1, Hp)        fc1 bias with BN shift folded in (f32)
        # w2_ref: (Hp, Cp)       fc2 weight (classes lane-padded)
        # b2_ref: (1, Cp)        fc2 bias (f32)
        # o_ref : (TN, Cp)       logits (written once, at the last MT step)
        # pooled_ref: (TN, K) f32 scratch — pooled-sum accumulator
        t = pl.program_id(1)
        nt = pl.num_programs(1)

        @pl.when(t == 0)
        def _init():
            pooled_ref[...] = jnp.zeros_like(pooled_ref)

        x = x_ref[...]                                   # (TN, TMT, K)
        if mask_needed:
            # The last MT tile hangs off the end of the array; out-of-range
            # rows hold unspecified data and must not feed the pooling sum.
            row = t * TMT + lax.broadcasted_iota(jnp.int32, (1, TMT, 1), 1)
            x = jnp.where(row < MT, x, jnp.zeros_like(x))

        # Partial pooled sum over this MT tile, accumulated in f32.  The
        # 1/(M*T) mean scale is folded into w1, so no extra scaling pass.
        pooled_ref[...] += jnp.sum(x, axis=1, dtype=jnp.float32)

        @pl.when(t == nt - 1)
        def _epilogue():
            pooled = pooled_ref[...]                     # (TN, K) f32
            # fc1 (+ folded BatchNorm): operands in the weight dtype, f32 acc.
            h = jnp.dot(pooled.astype(w1_ref.dtype), w1_ref[...],
                        preferred_element_type=jnp.float32)
            h = jnp.maximum(h + b1_ref[...], 0.0)        # bias + BN shift, ReLU
            # fc2
            logits = jnp.dot(h.astype(w2_ref.dtype), w2_ref[...],
                             preferred_element_type=jnp.float32)
            logits = logits + b2_ref[...]
            o_ref[...] = logits.astype(o_ref.dtype)      # lane-dense vst

    return kernel


def action_head_classification(feat, w1, b1, bn_gamma, bn_beta, bn_mean,
                               bn_var, w2, b2, *, bn_eps=1e-5,
                               tn_max=128, tmt_max=512,
                               x_vmem_budget_bytes=20 * 1024 * 1024):
    """feat: (N, M, T, J, C); w1: (K, H) with K=J*C; w2: (H, num_classes)."""
    N, M, T, J, C = feat.shape
    K = J * C
    H = w1.shape[1]
    num_classes = w2.shape[1]
    assert w1.shape[0] == K and w2.shape[0] == H

    compute_dtype = feat.dtype
    itemsize = jnp.dtype(compute_dtype).itemsize
    MT = M * T

    # ---- host-side constant folds (exact for eval-mode BN + mean scale) ----
    inv_mt = 1.0 / float(MT)
    bn_scale = bn_gamma / jnp.sqrt(bn_var + bn_eps)                  # (H,)
    w1_eff = (w1 * bn_scale[None, :]) * inv_mt                       # (K, H)
    b1_eff = (b1 - bn_mean) * bn_scale + bn_beta                     # (H,)

    # ---- weight-side lane padding only (H, num_classes); K stays unpadded --
    Hp = _round_up(H, 128)
    Cp = _round_up(num_classes, 128)
    Kp = _round_up(K, 128)            # only used for VMEM estimates

    w1_p = jnp.zeros((K, Hp), compute_dtype).at[:, :H].set(
        w1_eff.astype(compute_dtype))
    b1_p = jnp.zeros((1, Hp), jnp.float32).at[0, :H].set(
        b1_eff.astype(jnp.float32))
    w2_p = jnp.zeros((Hp, Cp), compute_dtype).at[:H, :num_classes].set(
        w2.astype(compute_dtype))
    b2_p = jnp.zeros((1, Cp), jnp.float32).at[0, :num_classes].set(
        b2.astype(jnp.float32))

    # Collapse (M, T) into one reduction axis — contiguous reshape, no HBM copy.
    x = feat.reshape(N, MT, K)

    # ---- tile selection (VMEM-budgeted, generation-safe) --------------------
    TN = max(8, min(_round_up(N, 8), _round_up(tn_max, 8)))
    if N >= 16 and pl.cdiv(N, TN) < 2:
        # v7x megacore: guarantee >= 2 steps on the "parallel" N axis.
        TN = max(8, _round_up(pl.cdiv(N, 2), 8))

    if MT <= 8:
        TMT = MT                      # block dim == full array dim (legal)
    else:
        TMT = max(8, (min(tmt_max, MT) // 8) * 8)

    def x_bytes(tn, tmt):
        # double-buffered x block, lanes padded to 128 / sublanes to 8 in VMEM
        return 2 * tn * _round_up(tmt, 8) * Kp * itemsize

    while x_bytes(TN, TMT) > x_vmem_budget_bytes:
        if TMT > 32:                                   # keep TMT >= 32 first
            TMT = max(32, ((TMT // 2) // 8) * 8)
        elif TN > 8:
            TN = max(8, ((TN // 2) // 8) * 8)
        elif TMT > 8:
            TMT = max(8, ((TMT // 2) // 8) * 8)
        else:
            break

    n_tiles = pl.cdiv(N, TN)
    t_tiles = pl.cdiv(MT, TMT)
    mask_needed = (MT % TMT) != 0
    Np_out = n_tiles * TN             # tiny output pad; x itself is never padded

    # ---- explicit scoped-VMEM limit -----------------------------------------
    vmem_needed = (
        x_bytes(TN, TMT)
        + 2 * (_round_up(K, 8) * Hp + Hp * Cp) * itemsize   # weights (x2 bufs)
        + 2 * 8 * (Hp + Cp) * 4                             # biases
        + 2 * TN * Cp * itemsize                            # output bufs
        + TN * Kp * 4                                       # pooled scratch
        + 2 * TN * (Hp + Cp) * 4)                           # epilogue temps
    vmem_limit = int(min(100 * 1024 * 1024,
                         max(vmem_needed + (4 << 20), 32 << 20)))

    kernel = _make_kernel(MT, TMT, mask_needed)

    out = pl.pallas_call(
        kernel,
        out_shape=jax.ShapeDtypeStruct((Np_out, Cp), compute_dtype),
        grid_spec=pltpu.PrefetchScalarGridSpec(
            num_scalar_prefetch=0,
            grid=(n_tiles, t_tiles),                      # reduction axis last
            in_specs=[
                pl.BlockSpec((TN, TMT, K), lambda i, t: (i, t, 0)),   # x tile
                pl.BlockSpec((K, Hp), lambda i, t: (0, 0)),   # w1 (DMA'd once)
                pl.BlockSpec((1, Hp), lambda i, t: (0, 0)),   # b1
                pl.BlockSpec((Hp, Cp), lambda i, t: (0, 0)),  # w2
                pl.BlockSpec((1, Cp), lambda i, t: (0, 0)),   # b2
            ],
            out_specs=pl.BlockSpec((TN, Cp), lambda i, t: (i, 0)),
            scratch_shapes=[pltpu.VMEM((TN, K), jnp.float32)],
        ),
        compiler_params=pltpu.CompilerParams(
            dimension_semantics=("parallel", "arbitrary"),
            vmem_limit_bytes=vmem_limit,
        ),
    )(x, w1_p, b1_p, w2_p, b2_p)

    # Rows >= N come from partial (unspecified) input blocks and are dropped
    # here; they never feed any cross-row reduction inside the kernel.
    return out[:N, :num_classes]


def reference(feat, w1, b1, bn_gamma, bn_beta, bn_mean, bn_var, w2, b2,
              bn_eps=1e-5):
    # Pure-JAX reference mirroring the torch code line by line (eval-mode BN).
    N, M, T, J, C = feat.shape
    f = jnp.transpose(feat, (0, 1, 3, 4, 2))          # (N, M, J, C, T)
    f = jnp.mean(f, axis=-1)                          # (N, M, J, C)
    f = f.reshape(N, M, -1)                           # (N, M, J*C)
    f = jnp.mean(f, axis=1)                           # (N, J*C)
    h = f @ w1 + b1                                   # fc1
    h = bn_gamma * (h - bn_mean) / jnp.sqrt(bn_var + bn_eps) + bn_beta
    h = jnp.maximum(h, 0.0)                           # ReLU
    return h @ w2 + b2                                # fc2


if __name__ == "__main__":
    # Small shapes consistent with the module:
    # dim_rep (C) = 32, num_joints (J) = 4, hidden_dim (H) = 128, classes = 10.
    # N=20, M=2, T=20 (MT=40) so that, together with tmt_max=16, the call
    # exercises multiple N tiles (incl. a partial last block), multiple MT
    # tiles, and the MT masking path — all at small sizes.
    N, M, T, J, C = 20, 2, 20, 4, 32
    H = 128
    num_classes = 10
    K = J * C

    key = jax.random.PRNGKey(0)
    keys = jax.random.split(key, 9)

    feat = jax.random.normal(keys[0], (N, M, T, J, C), dtype=jnp.float32)

    # nn.Linear-style init: U(-1/sqrt(fan_in), 1/sqrt(fan_in)).
    bound1 = 1.0 / (K ** 0.5)
    # torch stores weight as (H, K); we keep the transposed (K, H) for x @ W.
    w1 = jax.random.uniform(keys[1], (K, H), minval=-bound1, maxval=bound1,
                            dtype=jnp.float32)
    b1 = jax.random.uniform(keys[2], (H,), minval=-bound1, maxval=bound1,
                            dtype=jnp.float32)

    # BatchNorm1d running stats / affine params (eval mode).
    bn_gamma = 1.0 + 0.1 * jax.random.normal(keys[3], (H,), dtype=jnp.float32)
    bn_beta = 0.1 * jax.random.normal(keys[4], (H,), dtype=jnp.float32)
    bn_mean = 0.05 * jax.random.normal(keys[5], (H,), dtype=jnp.float32)
    bn_var = jnp.abs(1.0 + 0.1 * jax.random.normal(keys[6], (H,),
                                                   dtype=jnp.float32))

    bound2 = 1.0 / (H ** 0.5)
    w2 = jax.random.uniform(keys[7], (H, num_classes), minval=-bound2,
                            maxval=bound2, dtype=jnp.float32)
    b2 = jax.random.uniform(keys[8], (num_classes,), minval=-bound2,
                            maxval=bound2, dtype=jnp.float32)

    out = action_head_classification(feat, w1, b1, bn_gamma, bn_beta, bn_mean,
                                     bn_var, w2, b2, tmt_max=16)
    out = jax.block_until_ready(out)

    ref = reference(feat, w1, b1, bn_gamma, bn_beta, bn_mean, bn_var, w2, b2)
    assert out.shape == (N, num_classes)
    assert jnp.allclose(out, ref, atol=2e-4, rtol=2e-4), float(
        jnp.max(jnp.abs(out - ref)))

    print("KERNEL_OK")
</pallas_src>

<mosaic_0001>
module attributes {stable_mosaic.version = 11 : i64} {
  func.func @kernel(%arg0: i32, %arg1: i32, %arg2: memref<16x16x128xf32, #tpu.memory_space<vmem>>, %arg3: memref<128x128xf32, #tpu.memory_space<vmem>>, %arg4: memref<1x128xf32, #tpu.memory_space<vmem>>, %arg5: memref<128x128xf32, #tpu.memory_space<vmem>>, %arg6: memref<1x128xf32, #tpu.memory_space<vmem>>, %arg7: memref<16x128xf32, #tpu.memory_space<vmem>>, %arg8: memref<16x128xf32, #tpu.memory_space<vmem>>) attributes {dimension_semantics = [#tpu.dimension_semantics<parallel>, #tpu.dimension_semantics<arbitrary>], iteration_bounds = array<i64: 2, 3>, scalar_prefetch = 0 : i64, scratch_operands = 1 : i64, tpu.core_type = #tpu.core_type<tc>, window_params = [{transform_indices = @transform_0, window_bounds = array<i64: 16, 16, 128>}, {pipeline_mode = #tpu.pipeline_mode<synchronous>, transform_indices = @transform_1, window_bounds = array<i64: 128, 128>}, {pipeline_mode = #tpu.pipeline_mode<synchronous>, transform_indices = @transform_2, window_bounds = array<i64: 1, 128>}, {pipeline_mode = #tpu.pipeline_mode<synchronous>, transform_indices = @transform_3, window_bounds = array<i64: 128, 128>}, {pipeline_mode = #tpu.pipeline_mode<synchronous>, transform_indices = @transform_4, window_bounds = array<i64: 1, 128>}, {transform_indices = @transform_5, window_bounds = array<i64: 16, 128>}]} {
    %c0_i32 = arith.constant 0 : i32
    %0 = arith.cmpi eq, %arg1, %c0_i32 : i32
    %1 = arith.extui %0 : i1 to i32
    %c0_i32_0 = arith.constant 0 : i32
    %2 = arith.cmpi ne, %1, %c0_i32_0 : i32
    scf.if %2 {
      %cst_9 = arith.constant 0.000000e+00 : f32
      %21 = vector.broadcast %cst_9 : f32 to vector<16x128xf32>
      %c0_10 = arith.constant 0 : index
      %c0_11 = arith.constant 0 : index
      %22 = vector.load %arg8[%c0_10, %c0_11] : memref<16x128xf32, #tpu.memory_space<vmem>>, vector<16x128xf32>
      tpu.vector_store %arg8[%c0_10, %c0_11], %21 {strides = array<i32>} : memref<16x128xf32, #tpu.memory_space<vmem>>, vector<16x128xf32>,
    } else {
    }
    %c0 = arith.constant 0 : index
    %c0_1 = arith.constant 0 : index
    %c0_2 = arith.constant 0 : index
    %3 = vector.load %arg2[%c0, %c0_1, %c0_2] : memref<16x16x128xf32, #tpu.memory_space<vmem>>, vector<16x16x128xf32>
    %c16_i32 = arith.constant 16 : i32
    %4 = arith.muli %arg1, %c16_i32 : i32
    %5 = tpu.iota {dimensions = array<i32: 1>} : vector<1x16x1xi32>
    %6 = vector.broadcast %4 : i32 to vector<1x16x1xi32>
    %7 = arith.addi %6, %5 : vector<1x16x1xi32>
    %c40_i32 = arith.constant 40 : i32
    %8 = vector.broadcast %c40_i32 : i32 to vector<1x16x1xi32>
    %9 = arith.cmpi slt, %7, %8 : vector<1x16x1xi32>
    %cst = arith.constant 0.000000e+00 : f32
    %10 = vector.broadcast %cst : f32 to vector<16x16x128xf32>
    %11 = vector.shape_cast %9 : vector<1x16x1xi1> to vector<1x16x1xi1>
    %12 = vector.broadcast %11 : vector<1x16x1xi1> to vector<16x16x128xi1>
    %13 = arith.select %12, %3, %10 : vector<16x16x128xi1>, vector<16x16x128xf32>
    %c0_3 = arith.constant 0 : index
    %c0_4 = arith.constant 0 : index
    %14 = vector.load %arg8[%c0_3, %c0_4] : memref<16x128xf32, #tpu.memory_space<vmem>>, vector<16x128xf32>
    %cst_5 = arith.constant dense<0.000000e+00> : vector<16x128xf32>
    %15 = vector.multi_reduction <add>, %13, %cst_5 [1] : vector<16x16x128xf32> to vector<16x128xf32>
    %16 = arith.addf %14, %15 : vector<16x128xf32>
    %c0_6 = arith.constant 0 : index
    %c0_7 = arith.constant 0 : index
    %17 = vector.load %arg8[%c0_6, %c0_7] : memref<16x128xf32, #tpu.memory_space<vmem>>, vector<16x128xf32>
    tpu.vector_store %arg8[%c0_6, %c0_7], %16 {strides = array<i32>} : memref<16x128xf32, #tpu.memory_space<vmem>>, vector<16x128xf32>,
    %c2_i32 = arith.constant 2 : i32
    %18 = arith.cmpi eq, %arg1, %c2_i32 : i32
    %19 = arith.extui %18 : i1 to i32
    %c0_i32_8 = arith.constant 0 : i32
    %20 = arith.cmpi ne, %19, %c0_i32_8 : i32
    scf.if %20 {
      %c0_9 = arith.constant 0 : index
      %c0_10 = arith.constant 0 : index
      %21 = vector.load %arg8[%c0_9, %c0_10] : memref<16x128xf32, #tpu.memory_space<vmem>>, vector<16x128xf32>
      %c0_11 = arith.constant 0 : index
      %c0_12 = arith.constant 0 : index
      %22 = vector.load %arg3[%c0_11, %c0_12] : memref<128x128xf32, #tpu.memory_space<vmem>>, vector<128x128xf32>
      %cst_13 = arith.constant dense<0.000000e+00> : vector<16x128xf32>
      %23 = tpu.matmul %21, %22, %cst_13 {dimension_numbers = #tpu.dot_dimension_numbers<[1], [0], [0], [1], [0, 0, 1, 1], [], []>} : vector<16x128xf32>, vector<128x128xf32>, vector<16x128xf32> -> vector<16x128xf32>
      %c0_14 = arith.constant 0 : index
      %c0_15 = arith.constant 0 : index
      %24 = vector.load %arg4[%c0_14, %c0_15] : memref<1x128xf32, #tpu.memory_space<vmem>>, vector<1x128xf32>
      %25 = vector.broadcast %24 : vector<1x128xf32> to vector<16x128xf32>
      %26 = arith.addf %23, %25 : vector<16x128xf32>
      %cst_16 = arith.constant 0.000000e+00 : f32
      %27 = vector.broadcast %cst_16 : f32 to vector<16x128xf32>
      %28 = arith.maximumf %26, %27 : vector<16x128xf32>
      %c0_17 = arith.constant 0 : index
      %c0_18 = arith.constant 0 : index
      %29 = vector.load %arg5[%c0_17, %c0_18] : memref<128x128xf32, #tpu.memory_space<vmem>>, vector<128x128xf32>
      %cst_19 = arith.constant dense<0.000000e+00> : vector<16x128xf32>
      %30 = tpu.matmul %28, %29, %cst_19 {dimension_numbers = #tpu.dot_dimension_numbers<[1], [0], [0], [1], [0, 0, 1, 1], [], []>} : vector<16x128xf32>, vector<128x128xf32>, vector<16x128xf32> -> vector<16x128xf32>
      %c0_20 = arith.constant 0 : index
      %c0_21 = arith.constant 0 : index
      %31 = vector.load %arg6[%c0_20, %c0_21] : memref<1x128xf32, #tpu.memory_space<vmem>>, vector<1x128xf32>
      %32 = vector.broadcast %31 : vector<1x128xf32> to vector<16x128xf32>
      %33 = arith.addf %30, %32 : vector<16x128xf32>
      %c0_22 = arith.constant 0 : index
      %c0_23 = arith.constant 0 : index
      %34 = vector.load %arg7[%c0_22, %c0_23] : memref<16x128xf32, #tpu.memory_space<vmem>>, vector<16x128xf32>
      tpu.vector_store %arg7[%c0_22, %c0_23], %33 {strides = array<i32>} : memref<16x128xf32, #tpu.memory_space<vmem>>, vector<16x128xf32>,
    } else {
    }
    return
  }
  func.func @transform_0(%arg0: i32, %arg1: i32) -> (i32, i32, i32) {
    %c0_i32 = arith.constant 0 : i32
    %c0_i32_0 = arith.constant 0 : i32
    return %arg0, %arg1, %c0_i32 : i32, i32, i32
  }
  func.func @transform_1(%arg0: i32, %arg1: i32) -> (i32, i32) {
    %c0_i32 = arith.constant 0 : i32
    %c0_i32_0 = arith.constant 0 : i32
    %c0_i32_1 = arith.constant 0 : i32
    return %c0_i32, %c0_i32_0 : i32, i32
  }
  func.func @transform_2(%arg0: i32, %arg1: i32) -> (i32, i32) {
    %c0_i32 = arith.constant 0 : i32
    %c0_i32_0 = arith.constant 0 : i32
    %c0_i32_1 = arith.constant 0 : i32
    return %c0_i32, %c0_i32_0 : i32, i32
  }
  func.func @transform_3(%arg0: i32, %arg1: i32) -> (i32, i32) {
    %c0_i32 = arith.constant 0 : i32
    %c0_i32_0 = arith.constant 0 : i32
    %c0_i32_1 = arith.constant 0 : i32
    return %c0_i32, %c0_i32_0 : i32, i32
  }
  func.func @transform_4(%arg0: i32, %arg1: i32) -> (i32, i32) {
    %c0_i32 = arith.constant 0 : i32
    %c0_i32_0 = arith.constant 0 : i32
    %c0_i32_1 = arith.constant 0 : i32
    return %c0_i32, %c0_i32_0 : i32, i32
  }
  func.func @transform_5(%arg0: i32, %arg1: i32) -> (i32, i32) {
    %c0_i32 = arith.constant 0 : i32
    %c0_i32_0 = arith.constant 0 : i32
    return %arg0, %c0_i32 : i32, i32
  }
}

</mosaic_0001>

<llo_original>
// kernel: tpu_custom_call.1
$region0: #{tpu_custom_call.1}
  #allocation0 [shape = 'u32[]', space=smem, size = 0x4, offset = 0x4, fixed_abs, tag = 'smem constant byte address 0x4 - core index']
  #allocation1 [shape = 'u32[144,128]{1,0:T(1,128)}', space=vmem, size = 0x12000, scoped, tag = 'internal scratch']
  #allocation2 [shape = 'f32[16,128]{1,0:T(8,128)}', space=vmem, size = 0x2000, scoped, tag = 'scratch operand']
  #allocation10 [shape = 's32[]', space=sflag, size = 0x4, offset = 0, fixed_abs, tag = 'sflag constant byte address 0x0 - dummy sync flag']
  %s0 = inlined_call_operand.hbm [shape: f32[20,40,128], index: 0, kind: input, shape index: {}]
  %s1 = inlined_call_operand.hbm [shape: f32[128,128], index: 1, kind: input, shape index: {}]
  %s2 = inlined_call_operand.vmem [shape: f32[1,128], index: 2, kind: input, shape index: {}]
  %s3 = inlined_call_operand.hbm [shape: f32[128,128], index: 3, kind: input, shape index: {}]
  %s4 = inlined_call_operand.vmem [shape: f32[1,128], index: 4, kind: input, shape index: {}]
  %s5 = inlined_call_operand.hbm [shape: f32[32,128], index: 5, kind: output, shape index: {}]
  %s6 = sld [smem:[#allocation0]]
  $region73: #{tpu_custom_call.1} parent=0
    _
  %s8 = ssub.s32 1, %s6
  %s9 = scalar_select 0, %s8, %s6
  $region1: #{tpu_custom_call.1} parent=0
    #allocation3 [shape = 'u8[262144]{0}', space=vmem, size = 0x40000, scoped, tag = 'input window, operand 0']
    #allocation4 [shape = 's32[2]{0}', space=sflag, size = 0x8, scoped, tag = 'scoped memory for tpu_custom_call.1']
    #allocation5 [shape = 's32[2]{0}', space=sflag, size = 0x8, scoped, tag = 'scoped memory for tpu_custom_call.1']
    #allocation6 [shape = 'u8[65536]{0}', space=vmem, size = 0x10000, scoped, tag = 'input window, operand 1, single buffered']
    #allocation7 [shape = 's32[1]{0}', space=sflag, size = 0x4, scoped, tag = 'scoped memory for tpu_custom_call.1']
    #allocation8 [shape = 'u8[65536]{0}', space=vmem, size = 0x10000, scoped, tag = 'input window, operand 3, single buffered']
    #allocation9 [shape = 'u8[16384]{0}', space=vmem, size = 0x4000, scoped, tag = 'output window, operand 0']
    %10 = vsyncpa [#allocation4], 0
    %s11 = scalar_lea.sflag [#allocation4], 1
    %12 = vsyncpa %s11, 0
    %13 = vsyncpa [#allocation7], 0
    %14 = vsyncpa [#allocation5], 0
    %s15 = scalar_lea.sflag [#allocation5], 1
    %16 = vsyncpa %s15, 0
    loop: start=0, step=1, limit=8
    $region2: #{tpu_custom_call.1} parent=1 // loop_pre_header
      _
    $region3: #{tpu_custom_call.1} parent=1 // loop_header
      %s18 = sphi 0, %s22
      %p19 = scmp.ge.s32.totalorder %s18, 8
      %s25 = sphi 0, %s37
      %s26 = sphi 0, %s33
      %s27 = sphi 0, %s25
      %s28 = sphi 0, %s26
      %s29 = sphi 0, %s27
      %s30 = sphi 0, %s28
      %s42 = sphi 0, %s44
      %s45 = sphi 0, %s42
      %s46 = sphi 0, %s45
      %s62 = sphi 0, %s46
      %s66 = sphi 0, %s66
      %s68 = sphi 0, %s66
      %s69 = sphi 0, %s68
      %s83 = sphi 0, %s69
      %s87 = sphi 0, %s87
      %s89 = sphi 0, %s87
      %s90 = sphi 0, %s89
      %s104 = sphi 0, %s90
      %s108 = sphi 0, %s108
      %s110 = sphi 0, %s108
      %s111 = sphi 0, %s110
      %s125 = sphi 0, %s111
      %s129 = sphi 0, %s129
      %s131 = sphi 0, %s129
      %s132 = sphi 0, %s131
      %s146 = sphi 0, %s132
      %s152 = sphi 0, %s154
      %s155 = sphi 0, %s152
      %s156 = sphi 0, %s155
      %s172 = sphi 0, %s156
    $region4: #{tpu_custom_call.1} parent=1 // loop_header_branch
      %21 = sbr.rel (%p19) target = $region8
    $region5: #{tpu_custom_call.1} parent=1 // loop_body
      %s23 = ssub.s32 %s18, 1
      %s24 = ssub.s32 %s18, 2
      %s31 = sadd.s32 1, %s26
      %p32 = scmp.ge.s32.totalorder %s31, 3
      %s33 = scalar_select %p32, 0, %s31
      %s34 = sadd.s32 1, %s25
      %s35 = scalar_select %p32, %s34, %s25
      %p36 = scmp.ge.s32.totalorder %s35, 2
      %s37 = scalar_select %p36, 0, %s35
      %s38 = ssub.s32 %s25, %s37
      %s39 = ssub.s32 %s26, %s33
      %s40 = sor.u32 %s38, %s39
      %p41 = scmp.eq.s32.totalorder %s40, 0
      %s43 = sadd.s32 %s42, 1
      %s44 = scalar_select %p41, %s42, %s43
      %p47 = pneg %p41
      %p48 = scmp.eq.s32.totalorder %s18, 5
      %p49 = por %p47, %p48
      %p50 = scmp.ne.s32.totalorder %s42, %s45
      %p51 = scmp.eq.s32.totalorder %s18, 0
      %p52 = por %p50, %p51
      %p53 = scmp.ne.s32.totalorder %s42, %s45
      %p54 = scmp.eq.s32.totalorder %s23, 5
      %p55 = por %p53, %p54
      %p56 = scmp.ne.s32.totalorder %s45, %s46
      %p57 = scmp.eq.s32.totalorder %s23, 0
      %p58 = por %p56, %p57
      %p59 = scmp.ne.s32.totalorder %s45, %s46
      %p60 = scmp.eq.s32.totalorder %s24, 5
      %p61 = por %p59, %p60
      %p63 = scmp.ne.s32.totalorder %s46, %s62
      %p64 = scmp.eq.s32.totalorder %s24, 0
      %p65 = por %p63, %p64
      %s67 = sadd.s32 %s66, 1
      %p70 = scmp.eq.s32.totalorder %s18, 5
      %p71 = scmp.ne.s32.totalorder %s66, %s68
      %p72 = scmp.eq.s32.totalorder %s18, 0
      %p73 = por %p71, %p72
      %p74 = scmp.ne.s32.totalorder %s66, %s68
      %p75 = scmp.eq.s32.totalorder %s23, 5
      %p76 = por %p74, %p75
      %p77 = scmp.ne.s32.totalorder %s68, %s69
      %p78 = scmp.eq.s32.totalorder %s23, 0
      %p79 = por %p77, %p78
      %p80 = scmp.ne.s32.totalorder %s68, %s69
      %p81 = scmp.eq.s32.totalorder %s24, 5
      %p82 = por %p80, %p81
      %p84 = scmp.ne.s32.totalorder %s69, %s83
      %p85 = scmp.eq.s32.totalorder %s24, 0
      %p86 = por %p84, %p85
      %s88 = sadd.s32 %s87, 1
      %p91 = scmp.eq.s32.totalorder %s18, 5
      %p92 = scmp.ne.s32.totalorder %s87, %s89
      %p93 = scmp.eq.s32.totalorder %s18, 0
      %p94 = por %p92, %p93
      %p95 = scmp.ne.s32.totalorder %s87, %s89
      %p96 = scmp.eq.s32.totalorder %s23, 5
      %p97 = por %p95, %p96
      %p98 = scmp.ne.s32.totalorder %s89, %s90
      %p99 = scmp.eq.s32.totalorder %s23, 0
      %p100 = por %p98, %p99
      %p101 = scmp.ne.s32.totalorder %s89, %s90
      %p102 = scmp.eq.s32.totalorder %s24, 5
      %p103 = por %p101, %p102
      %p105 = scmp.ne.s32.totalorder %s90, %s104
      %p106 = scmp.eq.s32.totalorder %s24, 0
      %p107 = por %p105, %p106
      %s109 = sadd.s32 %s108, 1
      %p112 = scmp.eq.s32.totalorder %s18, 5
      %p113 = scmp.ne.s32.totalorder %s108, %s110
      %p114 = scmp.eq.s32.totalorder %s18, 0
      %p115 = por %p113, %p114
      %p116 = scmp.ne.s32.totalorder %s108, %s110
      %p117 = scmp.eq.s32.totalorder %s23, 5
      %p118 = por %p116, %p117
      %p119 = scmp.ne.s32.totalorder %s110, %s111
      %p120 = scmp.eq.s32.totalorder %s23, 0
      %p121 = por %p119, %p120
      %p122 = scmp.ne.s32.totalorder %s110, %s111
      %p123 = scmp.eq.s32.totalorder %s24, 5
      %p124 = por %p122, %p123
      %p126 = scmp.ne.s32.totalorder %s111, %s125
      %p127 = scmp.eq.s32.totalorder %s24, 0
      %p128 = por %p126, %p127
      %s130 = sadd.s32 %s129, 1
      %p133 = scmp.eq.s32.totalorder %s18, 5
      %p134 = scmp.ne.s32.totalorder %s129, %s131
      %p135 = scmp.eq.s32.totalorder %s18, 0
      %p136 = por %p134, %p135
      %p137 = scmp.ne.s32.totalorder %s129, %s131
      %p138 = scmp.eq.s32.totalorder %s23, 5
      %p139 = por %p137, %p138
      %p140 = scmp.ne.s32.totalorder %s131, %s132
      %p141 = scmp.eq.s32.totalorder %s23, 0
      %p142 = por %p140, %p141
      %p143 = scmp.ne.s32.totalorder %s131, %s132
      %p144 = scmp.eq.s32.totalorder %s24, 5
      %p145 = por %p143, %p144
      %p147 = scmp.ne.s32.totalorder %s132, %s146
      %p148 = scmp.eq.s32.totalorder %s24, 0
      %p149 = por %p147, %p148
      %s150 = ssub.s32 %s25, %s37
      %p151 = scmp.eq.s32.totalorder %s150, 0
      %s153 = sadd.s32 %s152, 1
      %s154 = scalar_select %p151, %s152, %s153
      %p157 = pneg %p151
      %p158 = scmp.eq.s32.totalorder %s18, 5
      %p159 = por %p157, %p158
      %p160 = scmp.ne.s32.totalorder %s152, %s155
      %p161 = scmp.eq.s32.totalorder %s18, 0
      %p162 = por %p160, %p161
      %p163 = scmp.ne.s32.totalorder %s152, %s155
      %p164 = scmp.eq.s32.totalorder %s23, 5
      %p165 = por %p163, %p164
      %p166 = scmp.ne.s32.totalorder %s155, %s156
      %p167 = scmp.eq.s32.totalorder %s23, 0
      %p168 = por %p166, %p167
      %p169 = scmp.ne.s32.totalorder %s155, %s156
      %p170 = scmp.eq.s32.totalorder %s24, 5
      %p171 = por %p169, %p170
      %p173 = scmp.ne.s32.totalorder %s156, %s172
      %p174 = scmp.eq.s32.totalorder %s24, 0
      %p175 = por %p173, %p174
      %p176 = scmp.le.s32.totalorder 1, %s18
      %p177 = scmp.lt.s32.totalorder %s18, 7
      %p178 = pnand %p176, %p177
      %p179 = pneg %p178
      // Predicated region
      $region9: #{tpu_custom_call.1} parent=5 // pred_check
        _
      $region10: #{tpu_custom_call.1} parent=5 // pred_check_branch
        %181 = sbr.rel (%p178) target = $region12
      $region11: #{tpu_custom_call.1} parent=5 // pred_region
        %s182 = ssub.s32 %s18, 1
        // Predicated region
        $region13: #{tpu_custom_call.1} parent=11 // pred_check
          %p183 = pneg %p79
        $region14: #{tpu_custom_call.1} parent=11 // pred_check_branch
          %185 = sbr.rel (%p183) target = $region16
        $region15: #{tpu_custom_call.1} parent=11 // pred_region
          %s187 = ssub.s32 2048, 2048
          %188 = vsyncadd [#allocation7], %s187
          %s189 = sshll.u32 [#allocation6], 4
          %s190 = int_to_ptr.vmem [resolvable:$true] %s189
          %195 = dma.hbm_to_vmem [thread:$0]  %s1, 2048, %s190, [#allocation7], 128, 128, 8
        $region16: #{tpu_custom_call.1} parent=11 // pred_fallthru
          _
        // Predicated region
        $region17: #{tpu_custom_call.1} parent=11 // pred_check
          %p196 = pneg %p100
        $region18: #{tpu_custom_call.1} parent=11 // pred_check_branch
          %198 = sbr.rel (%p196) target = $region20
        $region19: #{tpu_custom_call.1} parent=11 // pred_region
          _
        $region20: #{tpu_custom_call.1} parent=11 // pred_fallthru
          _
        // Predicated region
        $region21: #{tpu_custom_call.1} parent=11 // pred_check
          %p199 = pneg %p121
        $region22: #{tpu_custom_call.1} parent=11 // pred_check_branch
          %201 = sbr.rel (%p199) target = $region24
        $region23: #{tpu_custom_call.1} parent=11 // pred_region
          %s203 = ssub.s32 2048, 2048
          %204 = vsyncadd [#allocation7], %s203
          %s205 = sshll.u32 [#allocation8], 4
          %s206 = int_to_ptr.vmem [resolvable:$true] %s205
          %211 = dma.hbm_to_vmem [thread:$0]  %s3, 2048, %s206, [#allocation7], 128, 128, 8
        $region24: #{tpu_custom_call.1} parent=11 // pred_fallthru
          _
        // Predicated region
        $region25: #{tpu_custom_call.1} parent=11 // pred_check
          %p212 = pneg %p142
        $region26: #{tpu_custom_call.1} parent=11 // pred_check_branch
          %214 = sbr.rel (%p212) target = $region28
        $region27: #{tpu_custom_call.1} parent=11 // pred_region
          _
        $region28: #{tpu_custom_call.1} parent=11 // pred_fallthru
          _
      $region12: #{tpu_custom_call.1} parent=5 // pred_fallthru
        _
      %p215 = scmp.lt.s32.totalorder %s18, 6
      // Predicated region
      $region29: #{tpu_custom_call.1} parent=5 // pred_check
        %p216 = pneg %p215
      $region30: #{tpu_custom_call.1} parent=5 // pred_check_branch
        %218 = sbr.rel (%p216) target = $region32
      $region31: #{tpu_custom_call.1} parent=5 // pred_region
        // Predicated region
        $region33: #{tpu_custom_call.1} parent=31 // pred_check
          %p219 = pneg %p52
        $region34: #{tpu_custom_call.1} parent=31 // pred_check_branch
          %221 = sbr.rel (%p219) target = $region36
        $region35: #{tpu_custom_call.1} parent=31 // pred_region
          #allocation11 [shape = 'u32[6]{0}', space=smem, size = 0x18, scoped, tag = 'DMA stride descriptor']
          %s222 = sand.u32 %s42, 1
          %s223 = scalar_lea.sflag [#allocation4], %s222
          %s224 = sand.u32 %s42, 1
          %s225 = smul.addr %s224, 256
          %s226 = scalar_lea.vmem [#allocation3], %s225
          %s227 = smul.u32 16, %s25
          %s228 = smul.u32 2, %s26
          %s229 = ssub.s32 20, %s227
          %p230 = scmp.lt.s32.totalorder %s229, 16
          %s231 = scalar_select %p230, %s229, 16
          %s232 = smul.u32 128, %s231
          %s233 = ssub.s32 5, %s228
          %p234 = scmp.lt.s32.totalorder %s233, 2
          %s235 = scalar_select %p234, %s233, 2
          %s236 = smul.u32 %s232, %s235
          %s238 = ssub.s32 4096, %s236
          %239 = vsyncadd %s223, %s238
          %p240 = scmp.ne.s32.totalorder 0, %s236
          %s241 = smul.addr %s227, 5
          %s242 = sadd.s32 %s228, %s241
          %s243 = smul.addr %s242, 128
          %s244 = scalar_lea.hbm %s0, %s243
          %s245 = smul.u32 8, %s235
          %s246 = smul.u32 %s245, %s231
          %s248 = sshll.u32 1, 14
          %s249 = sxor.u32 4294967295, %s248
          %s251 = sld [smem:[#allocation0]]
          %s252 = sadd.s32 2, %s251
          %s254 = sshll.u32 7, 26
          %s255 = sxor.u32 4294967295, %s254
          %s256 = sand.u32 0, %s255
          %s257 = sshll.u32 %s252, 26
          %s258 = sor.u32 %s256, %s257
          %s259 = sshll.u32 %s226, 4
          %s260 = int_to_ptr.vmem [resolvable:$true] %s259
          %s261 = sshll.u32 %s246, 4
          %266 = sst [smem:[#allocation11]] 640
          %s267 = scalar_lea.smem [#allocation11], 1
          %268 = sst [smem:[%s267]] 256
          %s269 = scalar_lea.smem [#allocation11], 2
          %270 = sst [smem:[%s269]] %s235
          %s271 = scalar_lea.smem [#allocation11], 3
          %272 = sst [smem:[%s271]] 128
          %s273 = scalar_lea.smem [#allocation11], 4
          %274 = sst [smem:[%s273]] 128
          %s275 = scalar_lea.smem [#allocation11], 5
          %276 = sst [smem:[%s275]] 8
          %278 = dma.general (%p240), %s244, %s261, %s260, %s223, [#allocation10], [#allocation11], %s258, 0
        $region36: #{tpu_custom_call.1} parent=31 // pred_fallthru
          _
      $region32: #{tpu_custom_call.1} parent=5 // pred_fallthru
        _
      %p279 = scmp.le.s32.totalorder 1, %s18
      %p280 = scmp.lt.s32.totalorder %s18, 7
      %p281 = pnand %p279, %p280
      %p282 = pneg %p281
      // Predicated region
      $region37: #{tpu_custom_call.1} parent=5 // pred_check
        _
      $region38: #{tpu_custom_call.1} parent=5 // pred_check_branch
        %284 = sbr.rel (%p281) target = $region40
      $region39: #{tpu_custom_call.1} parent=5 // pred_region
        %s285 = ssub.s32 %s18, 1
        %s286 = sand.u32 %s45, 1
        %s287 = scalar_lea.sflag [#allocation4], %s286
        %s288 = sand.u32 %s45, 1
        %s289 = smul.addr %s288, 256
        %s290 = scalar_lea.vmem [#allocation3], %s289
        // Predicated region
        $region41: #{tpu_custom_call.1} parent=39 // pred_check
          %p291 = pneg %p58
        $region42: #{tpu_custom_call.1} parent=39 // pred_check_branch
          %293 = sbr.rel (%p291) target = $region44
        $region43: #{tpu_custom_call.1} parent=39 // pred_region
          %294 = dma.done %s287, 4096
        $region44: #{tpu_custom_call.1} parent=39 // pred_fallthru
          _
        // Predicated region
        $region45: #{tpu_custom_call.1} parent=39 // pred_check
          %p295 = pneg %p79
        $region46: #{tpu_custom_call.1} parent=39 // pred_check_branch
          %297 = sbr.rel (%p295) target = $region48
        $region47: #{tpu_custom_call.1} parent=39 // pred_region
          %298 = dma.done [#allocation7], 2048
        $region48: #{tpu_custom_call.1} parent=39 // pred_fallthru
          _
        // Predicated region
        $region49: #{tpu_custom_call.1} parent=39 // pred_check
          %p299 = pneg %p121
        $region50: #{tpu_custom_call.1} parent=39 // pred_check_branch
          %301 = sbr.rel (%p299) target = $region52
        $region51: #{tpu_custom_call.1} parent=39 // pred_region
          %302 = dma.done [#allocation7], 2048
        $region52: #{tpu_custom_call.1} parent=39 // pred_fallthru
          _
        %s303 = sand.u32 %s45, 1
        %s304 = scalar_lea.sflag [#allocation4], %s303
        %s305 = sand.u32 %s45, 1
        %s306 = smul.addr %s305, 256
        %s307 = scalar_lea.vmem [#allocation3], %s306
        %p308 = pneg %p58
        %p309 = pneg %p55
        %p310 = pneg %p79
        %p311 = pneg %p76
        %p312 = pneg %p100
        %p313 = pneg %p97
        %p314 = pneg %p121
        %p315 = pneg %p118
        %p316 = pneg %p142
        %p317 = pneg %p139
        %p318 = pneg %p168
        %p319 = pneg %p165
        %s320 = sand.u32 %s155, 1
        %s321 = scalar_lea.sflag [#allocation5], %s320
        %s322 = sand.u32 %s155, 1
        %s323 = smul.addr %s322, 16
        %s324 = scalar_lea.vmem [#allocation9], %s323
        %s325 = smul.u32 16, %s27
        %s326 = smul.u32 2, %s28
        %s327 = ssub.s32 20, %s325
        %p328 = scmp.lt.s32.totalorder %s327, 16
        %s329 = scalar_select %p328, %s327, 16
        %s330 = smul.u32 128, %s329
        %s331 = ssub.s32 5, %s326
        %p332 = scmp.lt.s32.totalorder %s331, 2
        %s333 = scalar_select %p332, %s331, 2
        %s334 = smul.u32 %s330, %s333
        %s335 = smul.u32 2, %s27
        %p336 = scmp.eq.s32.totalorder %s28, 0
        // Predicated region
        $region53: #{tpu_custom_call.1} parent=39 // pred_check
          %p337 = pneg %p336
        $region54: #{tpu_custom_call.1} parent=39 // pred_check_branch
          %339 = sbr.rel (%p337) target = $region56
        $region55: #{tpu_custom_call.1} parent=39 // pred_region
          %340 = vst [vmem:[#allocation2] sm:$0xff] 0.0
          %341 = vst [vmem:[#allocation2 + $0x8] sm:$0xff] 0.0
        $region56: #{tpu_custom_call.1} parent=39 // pred_fallthru
          _
        %v342 = vld [vmem:[%s290] sm:$0xff]
        %v343 = vld [vmem:[%s290 + $0x8] sm:$0xff]
        %v344 = vld [vmem:[%s290 + $0x10] sm:$0xff]
        %v345 = vld [vmem:[%s290 + $0x18] sm:$0xff]
        %v346 = vld [vmem:[%s290 + $0x20] sm:$0xff]
        %v347 = vld [vmem:[%s290 + $0x28] sm:$0xff]
        %v348 = vld [vmem:[%s290 + $0x30] sm:$0xff]
        %v349 = vld [vmem:[%s290 + $0x38] sm:$0xff]
        %v350 = vld [vmem:[%s290 + $0x40] sm:$0xff]
        %v351 = vld [vmem:[%s290 + $0x48] sm:$0xff]
        %v352 = vld [vmem:[%s290 + $0x50] sm:$0xff]
        %v353 = vld [vmem:[%s290 + $0x58] sm:$0xff]
        %v354 = vld [vmem:[%s290 + $0x60] sm:$0xff]
        %v355 = vld [vmem:[%s290 + $0x68] sm:$0xff]
        %v356 = vld [vmem:[%s290 + $0x70] sm:$0xff]
        %v357 = vld [vmem:[%s290 + $0x78] sm:$0xff]
        %v358 = vld [vmem:[%s290 + $0x80] sm:$0xff]
        %v359 = vld [vmem:[%s290 + $0x88] sm:$0xff]
        %v360 = vld [vmem:[%s290 + $0x90] sm:$0xff]
        %v361 = vld [vmem:[%s290 + $0x98] sm:$0xff]
        %v362 = vld [vmem:[%s290 + $0xa0] sm:$0xff]
        %v363 = vld [vmem:[%s290 + $0xa8] sm:$0xff]
        %v364 = vld [vmem:[%s290 + $0xb0] sm:$0xff]
        %v365 = vld [vmem:[%s290 + $0xb8] sm:$0xff]
        %v366 = vld [vmem:[%s290 + $0xc0] sm:$0xff]
        %v367 = vld [vmem:[%s290 + $0xc8] sm:$0xff]
        %v368 = vld [vmem:[%s290 + $0xd0] sm:$0xff]
        %v369 = vld [vmem:[%s290 + $0xd8] sm:$0xff]
        %v370 = vld [vmem:[%s290 + $0xe0] sm:$0xff]
        %v371 = vld [vmem:[%s290 + $0xe8] sm:$0xff]
        %v372 = vld [vmem:[%s290 + $0xf0] sm:$0xff]
        %v373 = vld [vmem:[%s290 + $0xf8] sm:$0xff]
        %s374 = smul.u32 %s28, 16
        %v375 = vlaneseq
        %v376 = vshrl.u32 %v375, 7
        %v377 = vadd.s32 %v376, 8
        %v378 = vstv %s374
        %v379 = vadd.s32 %v378, %v376
        %v380 = vadd.s32 %v378, %v377
        %vm381 = vcmp.lt.s32.totalorder %v379, 40
        %vm382 = vcmp.lt.s32.totalorder %v380, 40
        %v383 = vsel %vm381, 1, 0
        %v384 = vsel %vm382, 1, 0
        %vm385 = vcmp.eq.s32.totalorder %v383, 1
        %vm386 = vcmp.eq.s32.totalorder %v384, 1
        %v387 = vsel %vm385, %v342, 0.0
        %v388 = vsel %vm386, %v343, 0.0
        %v389 = vsel %vm385, %v344, 0.0
        %v390 = vsel %vm386, %v345, 0.0
        %v391 = vsel %vm385, %v346, 0.0
        %v392 = vsel %vm386, %v347, 0.0
        %v393 = vsel %vm385, %v348, 0.0
        %v394 = vsel %vm386, %v349, 0.0
        %v395 = vsel %vm385, %v350, 0.0
        %v396 = vsel %vm386, %v351, 0.0
        %v397 = vsel %vm385, %v352, 0.0
        %v398 = vsel %vm386, %v353, 0.0
        %v399 = vsel %vm385, %v354, 0.0
        %v400 = vsel %vm386, %v355, 0.0
        %v401 = vsel %vm385, %v356, 0.0
        %v402 = vsel %vm386, %v357, 0.0
        %v403 = vsel %vm385, %v358, 0.0
        %v404 = vsel %vm386, %v359, 0.0
        %v405 = vsel %vm385, %v360, 0.0
        %v406 = vsel %vm386, %v361, 0.0
        %v407 = vsel %vm385, %v362, 0.0
        %v408 = vsel %vm386, %v363, 0.0
        %v409 = vsel %vm385, %v364, 0.0
        %v410 = vsel %vm386, %v365, 0.0
        %v411 = vsel %vm385, %v366, 0.0
        %v412 = vsel %vm386, %v367, 0.0
        %v413 = vsel %vm385, %v368, 0.0
        %v414 = vsel %vm386, %v369, 0.0
        %v415 = vsel %vm385, %v370, 0.0
        %v416 = vsel %vm386, %v371, 0.0
        %v417 = vsel %vm385, %v372, 0.0
        %v418 = vsel %vm386, %v373, 0.0
        %v419 = vld [vmem:[#allocation2] sm:$0xff]
        %v420 = vld [vmem:[#allocation2 + $0x8] sm:$0xff]
        %v421 = vadd.f32 %v387, %v388
        %v422 = vrot.slane %v421, 4
        %v423 = vadd.f32 %v421, %v422
        %v424 = vrot.slane %v423, 2
        %v425 = vadd.f32 %v423, %v424
        %v426 = vrot.slane %v425, 1
        %v427 = vadd.f32 %v425, %v426
        %v428 = vadd.f32 %v389, %v390
        %v429 = vrot.slane %v428, 4
        %v430 = vadd.f32 %v428, %v429
        %v431 = vrot.slane %v430, 2
        %v432 = vadd.f32 %v430, %v431
        %v433 = vrot.slane %v432, 1
        %v434 = vadd.f32 %v432, %v433
        %v435 = vadd.f32 %v391, %v392
        %v436 = vrot.slane %v435, 4
        %v437 = vadd.f32 %v435, %v436
        %v438 = vrot.slane %v437, 2
        %v439 = vadd.f32 %v437, %v438
        %v440 = vrot.slane %v439, 1
        %v441 = vadd.f32 %v439, %v440
        %v442 = vadd.f32 %v393, %v394
        %v443 = vrot.slane %v442, 4
        %v444 = vadd.f32 %v442, %v443
        %v445 = vrot.slane %v444, 2
        %v446 = vadd.f32 %v444, %v445
        %v447 = vrot.slane %v446, 1
        %v448 = vadd.f32 %v446, %v447
        %v449 = vadd.f32 %v395, %v396
        %v450 = vrot.slane %v449, 4
        %v451 = vadd.f32 %v449, %v450
        %v452 = vrot.slane %v451, 2
        %v453 = vadd.f32 %v451, %v452
        %v454 = vrot.slane %v453, 1
        %v455 = vadd.f32 %v453, %v454
        %v456 = vadd.f32 %v397, %v398
        %v457 = vrot.slane %v456, 4
        %v458 = vadd.f32 %v456, %v457
        %v459 = vrot.slane %v458, 2
        %v460 = vadd.f32 %v458, %v459
        %v461 = vrot.slane %v460, 1
        %v462 = vadd.f32 %v460, %v461
        %v463 = vadd.f32 %v399, %v400
        %v464 = vrot.slane %v463, 4
        %v465 = vadd.f32 %v463, %v464
        %v466 = vrot.slane %v465, 2
        %v467 = vadd.f32 %v465, %v466
        %v468 = vrot.slane %v467, 1
        %v469 = vadd.f32 %v467, %v468
        %v470 = vadd.f32 %v401, %v402
        %v471 = vrot.slane %v470, 4
        %v472 = vadd.f32 %v470, %v471
        %v473 = vrot.slane %v472, 2
        %v474 = vadd.f32 %v472, %v473
        %v475 = vrot.slane %v474, 1
        %v476 = vadd.f32 %v474, %v475
        %v477 = vadd.f32 %v403, %v404
        %v478 = vrot.slane %v477, 4
        %v479 = vadd.f32 %v477, %v478
        %v480 = vrot.slane %v479, 2
        %v481 = vadd.f32 %v479, %v480
        %v482 = vrot.slane %v481, 1
        %v483 = vadd.f32 %v481, %v482
        %v484 = vadd.f32 %v405, %v406
        %v485 = vrot.slane %v484, 4
        %v486 = vadd.f32 %v484, %v485
        %v487 = vrot.slane %v486, 2
        %v488 = vadd.f32 %v486, %v487
        %v489 = vrot.slane %v488, 1
        %v490 = vadd.f32 %v488, %v489
        %v491 = vadd.f32 %v407, %v408
        %v492 = vrot.slane %v491, 4
        %v493 = vadd.f32 %v491, %v492
        %v494 = vrot.slane %v493, 2
        %v495 = vadd.f32 %v493, %v494
        %v496 = vrot.slane %v495, 1
        %v497 = vadd.f32 %v495, %v496
        %v498 = vadd.f32 %v409, %v410
        %v499 = vrot.slane %v498, 4
        %v500 = vadd.f32 %v498, %v499
        %v501 = vrot.slane %v500, 2
        %v502 = vadd.f32 %v500, %v501
        %v503 = vrot.slane %v502, 1
        %v504 = vadd.f32 %v502, %v503
        %v505 = vadd.f32 %v411, %v412
        %v506 = vrot.slane %v505, 4
        %v507 = vadd.f32 %v505, %v506
        %v508 = vrot.slane %v507, 2
        %v509 = vadd.f32 %v507, %v508
        %v510 = vrot.slane %v509, 1
        %v511 = vadd.f32 %v509, %v510
        %v512 = vadd.f32 %v413, %v414
        %v513 = vrot.slane %v512, 4
        %v514 = vadd.f32 %v512, %v513
        %v515 = vrot.slane %v514, 2
        %v516 = vadd.f32 %v514, %v515
        %v517 = vrot.slane %v516, 1
        %v518 = vadd.f32 %v516, %v517
        %v519 = vadd.f32 %v415, %v416
        %v520 = vrot.slane %v519, 4
        %v521 = vadd.f32 %v519, %v520
        %v522 = vrot.slane %v521, 2
        %v523 = vadd.f32 %v521, %v522
        %v524 = vrot.slane %v523, 1
        %v525 = vadd.f32 %v523, %v524
        %v526 = vadd.f32 %v417, %v418
        %v527 = vrot.slane %v526, 4
        %v528 = vadd.f32 %v526, %v527
        %v529 = vrot.slane %v528, 2
        %v530 = vadd.f32 %v528, %v529
        %v531 = vrot.slane %v530, 1
        %v532 = vadd.f32 %v530, %v531
        %vm549 = vcmask 1041409
        %v550 = vsel %vm549, %v434, %v427
        %vm551 = vcmask 1042434
        %v552 = vsel %vm551, %v441, %v550
        %vm553 = vcmask 1043459
        %v554 = vsel %vm553, %v448, %v552
        %vm555 = vcmask 1044484
        %v556 = vsel %vm555, %v455, %v554
        %vm557 = vcmask 1045509
        %v558 = vsel %vm557, %v462, %v556
        %vm559 = vcmask 1046534
        %v560 = vsel %vm559, %v469, %v558
        %vm561 = vcmask 1047559
        %v562 = vsel %vm561, %v476, %v560
        %v563 = vsel %vm549, %v490, %v483
        %v564 = vsel %vm551, %v497, %v563
        %v565 = vsel %vm553, %v504, %v564
        %v566 = vsel %vm555, %v511, %v565
        %v567 = vsel %vm557, %v518, %v566
        %v568 = vsel %vm559, %v525, %v567
        %v569 = vsel %vm561, %v532, %v568
        %v572 = vadd.f32 %v419, %v562
        %v573 = vadd.f32 %v420, %v569
        %574 = vst [vmem:[#allocation2] sm:$0xff] %v572
        %575 = vst [vmem:[#allocation2 + $0x8] sm:$0xff] %v573
        %p576 = scmp.eq.s32.totalorder %s28, 2
        // Predicated region
        $region57: #{tpu_custom_call.1} parent=39 // pred_check
          %p577 = pneg %p576
        $region58: #{tpu_custom_call.1} parent=39 // pred_check_branch
          %579 = sbr.rel (%p577) target = $region60
        $region59: #{tpu_custom_call.1} parent=39 // pred_region
          %v580 = vld [vmem:[#allocation2] sm:$0xff]
          %v581 = vld [vmem:[#allocation2 + $0x8] sm:$0xff]
          %v582 = vld [vmem:[#allocation6] sm:$0xff]
          %v583 = vld [vmem:[#allocation6 + $0x8] sm:$0xff]
          %v584 = vld [vmem:[#allocation6 + $0x10] sm:$0xff]
          %v585 = vld [vmem:[#allocation6 + $0x18] sm:$0xff]
          %v586 = vld [vmem:[#allocation6 + $0x20] sm:$0xff]
          %v587 = vld [vmem:[#allocation6 + $0x28] sm:$0xff]
          %v588 = vld [vmem:[#allocation6 + $0x30] sm:$0xff]
          %v589 = vld [vmem:[#allocation6 + $0x38] sm:$0xff]
          %v590 = vld [vmem:[#allocation6 + $0x40] sm:$0xff]
          %v591 = vld [vmem:[#allocation6 + $0x48] sm:$0xff]
          %v592 = vld [vmem:[#allocation6 + $0x50] sm:$0xff]
          %v593 = vld [vmem:[#allocation6 + $0x58] sm:$0xff]
          %v594 = vld [vmem:[#allocation6 + $0x60] sm:$0xff]
          %v595 = vld [vmem:[#allocation6 + $0x68] sm:$0xff]
          %v596 = vld [vmem:[#allocation6 + $0x70] sm:$0xff]
          %v597 = vld [vmem:[#allocation6 + $0x78] sm:$0xff]
          %v598 = vld [vmem:[%s2] sm:$0x1]
          %v600 = vlaneseq
          %v601 = vshrl.u32 %v600, 7
          %v602 = vsub.s32 0, %v601
          %v603 = vrot.slane %v598, %v602
          %605 = vmatprep.subr.mxu0 0.0
          %606 = vmatpush1.msra.mxu0 %v582
          %607 = vmatprep.subr.mxu0 0.0
          %608 = vmatpush1.msra.mxu0 %v583
          %609 = vmatprep.subr.mxu0 0.0
          %610 = vmatpush1.msra.mxu0 %v584
          %611 = vmatprep.subr.mxu0 0.0
          %612 = vmatpush1.msra.mxu0 %v585
          %613 = vmatprep.subr.mxu0 0.0
          %614 = vmatpush1.msra.mxu0 %v586
          %615 = vmatprep.subr.mxu0 0.0
          %616 = vmatpush1.msra.mxu0 %v587
          %617 = vmatprep.subr.mxu0 0.0
          %618 = vmatpush1.msra.mxu0 %v588
          %619 = vmatprep.subr.mxu0 0.0
          %620 = vmatpush1.msra.mxu0 %v589
          %621 = vmatprep.subr.mxu0 0.0
          %622 = vmatpush1.msra.mxu0 %v590
          %623 = vmatprep.subr.mxu0 0.0
          %624 = vmatpush1.msra.mxu0 %v591
          %625 = vmatprep.subr.mxu0 0.0
          %626 = vmatpush1.msra.mxu0 %v592
          %627 = vmatprep.subr.mxu0 0.0
          %628 = vmatpush1.msra.mxu0 %v593
          %629 = vmatprep.subr.mxu0 0.0
          %630 = vmatpush1.msra.mxu0 %v594
          %631 = vmatprep.subr.mxu0 0.0
          %632 = vmatpush1.msra.mxu0 %v595
          %633 = vmatprep.subr.mxu0 0.0
          %634 = vmatpush1.msra.mxu0 %v596
          %635 = vmatprep.subr.mxu0 0.0
          %636 = vmatpush1.msra.mxu0 %v597
          %637 = vmatprep.subr.mxu0 0.0
          %638 = vmatpush1.msra.mxu0 0.0
          %639 = vmatprep.subr.mxu0 0.0
          %640 = vmatpush1.msra.mxu0 0.0
          %641 = vmatprep.subr.mxu0 0.0
          %642 = vmatpush1.msra.mxu0 0.0
          %643 = vmatprep.subr.mxu0 0.0
          %644 = vmatpush1.msra.mxu0 0.0
          %645 = vmatprep.subr.mxu0 0.0
          %646 = vmatpush1.msra.mxu0 0.0
          %647 = vmatprep.subr.mxu0 0.0
          %648 = vmatpush1.msra.mxu0 0.0
          %649 = vmatprep.subr.mxu0 0.0
          %650 = vmatpush1.msra.mxu0 0.0
          %651 = vmatprep.subr.mxu0 0.0
          %652 = vmatpush1.msra.mxu0 0.0
          %653 = vmatprep.subr.mxu0 0.0
          %654 = vmatpush1.msra.mxu0 0.0
          %655 = vmatprep.subr.mxu0 0.0
          %656 = vmatpush1.msra.mxu0 0.0
          %657 = vmatprep.subr.mxu0 0.0
          %658 = vmatpush1.msra.mxu0 0.0
          %659 = vmatprep.subr.mxu0 0.0
          %660 = vmatpush1.msra.mxu0 0.0
          %661 = vmatprep.subr.mxu0 0.0
          %662 = vmatpush1.msra.mxu0 0.0
          %663 = vmatprep.subr.mxu0 0.0
          %664 = vmatpush1.msra.mxu0 0.0
          %665 = vmatprep.subr.mxu0 0.0
          %666 = vmatpush1.msra.mxu0 0.0
          %667 = vmatprep.subr.mxu0 0.0
          %668 = vmatpush1.msra.mxu0 0.0
          %669 = vmatprep.mubr.f32.mxu0 0.0
          %670 = vmatmul.mubr.f32.gmra.mrb[0].mxu0 %v580
          %v671 = vpop.f32.mrb[0].mxu0
          %v672 = vadd.f32 %v603, %v671
          %v673 = vpop.f32.mrb[0].mxu0
          %674 = vmatprep.mubr.f32.mxu0 0.0
          %675 = vmatmul.mubr.f32.gmra.mrb[0].mxu0 %v581
          %v676 = vpop.f32.mrb[0].mxu0
          %v677 = vadd.f32 %v603, %v676
          %v678 = vpop.f32.mrb[0].mxu0
          %679 = vdwg.mxu0
          %v680 = vmax.f32 %v672, 0.0
          %v681 = vmax.f32 %v677, 0.0
          %v682 = vld [vmem:[#allocation8] sm:$0xff]
          %v683 = vld [vmem:[#allocation8 + $0x8] sm:$0xff]
          %v684 = vld [vmem:[#allocation8 + $0x10] sm:$0xff]
          %v685 = vld [vmem:[#allocation8 + $0x18] sm:$0xff]
          %v686 = vld [vmem:[#allocation8 + $0x20] sm:$0xff]
          %v687 = vld [vmem:[#allocation8 + $0x28] sm:$0xff]
          %v688 = vld [vmem:[#allocation8 + $0x30] sm:$0xff]
          %v689 = vld [vmem:[#allocation8 + $0x38] sm:$0xff]
          %v690 = vld [vmem:[#allocation8 + $0x40] sm:$0xff]
          %v691 = vld [vmem:[#allocation8 + $0x48] sm:$0xff]
          %v692 = vld [vmem:[#allocation8 + $0x50] sm:$0xff]
          %v693 = vld [vmem:[#allocation8 + $0x58] sm:$0xff]
          %v694 = vld [vmem:[#allocation8 + $0x60] sm:$0xff]
          %v695 = vld [vmem:[#allocation8 + $0x68] sm:$0xff]
          %v696 = vld [vmem:[#allocation8 + $0x70] sm:$0xff]
          %v697 = vld [vmem:[#allocation8 + $0x78] sm:$0xff]
          %v698 = vld [vmem:[%s4] sm:$0x1]
          %v700 = vlaneseq
          %v701 = vshrl.u32 %v700, 7
          %v702 = vsub.s32 0, %v701
          %v703 = vrot.slane %v698, %v702
          %705 = vmatprep.subr.mxu0 0.0
          %706 = vmatpush1.msra.mxu0 %v682
          %707 = vmatprep.subr.mxu0 0.0
          %708 = vmatpush1.msra.mxu0 %v683
          %709 = vmatprep.subr.mxu0 0.0
          %710 = vmatpush1.msra.mxu0 %v684
          %711 = vmatprep.subr.mxu0 0.0
          %712 = vmatpush1.msra.mxu0 %v685
          %713 = vmatprep.subr.mxu0 0.0
          %714 = vmatpush1.msra.mxu0 %v686
          %715 = vmatprep.subr.mxu0 0.0
          %716 = vmatpush1.msra.mxu0 %v687
          %717 = vmatprep.subr.mxu0 0.0
          %718 = vmatpush1.msra.mxu0 %v688
          %719 = vmatprep.subr.mxu0 0.0
          %720 = vmatpush1.msra.mxu0 %v689
          %721 = vmatprep.subr.mxu0 0.0
          %722 = vmatpush1.msra.mxu0 %v690
          %723 = vmatprep.subr.mxu0 0.0
          %724 = vmatpush1.msra.mxu0 %v691
          %725 = vmatprep.subr.mxu0 0.0
          %726 = vmatpush1.msra.mxu0 %v692
          %727 = vmatprep.subr.mxu0 0.0
          %728 = vmatpush1.msra.mxu0 %v693
          %729 = vmatprep.subr.mxu0 0.0
          %730 = vmatpush1.msra.mxu0 %v694
          %731 = vmatprep.subr.mxu0 0.0
          %732 = vmatpush1.msra.mxu0 %v695
          %733 = vmatprep.subr.mxu0 0.0
          %734 = vmatpush1.msra.mxu0 %v696
          %735 = vmatprep.subr.mxu0 0.0
          %736 = vmatpush1.msra.mxu0 %v697
          %737 = vmatprep.subr.mxu0 0.0
          %738 = vmatpush1.msra.mxu0 0.0
          %739 = vmatprep.subr.mxu0 0.0
          %740 = vmatpush1.msra.mxu0 0.0
          %741 = vmatprep.subr.mxu0 0.0
          %742 = vmatpush1.msra.mxu0 0.0
          %743 = vmatprep.subr.mxu0 0.0
          %744 = vmatpush1.msra.mxu0 0.0
          %745 = vmatprep.subr.mxu0 0.0
          %746 = vmatpush1.msra.mxu0 0.0
          %747 = vmatprep.subr.mxu0 0.0
          %748 = vmatpush1.msra.mxu0 0.0
          %749 = vmatprep.subr.mxu0 0.0
          %750 = vmatpush1.msra.mxu0 0.0
          %751 = vmatprep.subr.mxu0 0.0
          %752 = vmatpush1.msra.mxu0 0.0
          %753 = vmatprep.subr.mxu0 0.0
          %754 = vmatpush1.msra.mxu0 0.0
          %755 = vmatprep.subr.mxu0 0.0
          %756 = vmatpush1.msra.mxu0 0.0
          %757 = vmatprep.subr.mxu0 0.0
          %758 = vmatpush1.msra.mxu0 0.0
          %759 = vmatprep.subr.mxu0 0.0
          %760 = vmatpush1.msra.mxu0 0.0
          %761 = vmatprep.subr.mxu0 0.0
          %762 = vmatpush1.msra.mxu0 0.0
          %763 = vmatprep.subr.mxu0 0.0
          %764 = vmatpush1.msra.mxu0 0.0
          %765 = vmatprep.subr.mxu0 0.0
          %766 = vmatpush1.msra.mxu0 0.0
          %767 = vmatprep.subr.mxu0 0.0
          %768 = vmatpush1.msra.mxu0 0.0
          %769 = vmatprep.mubr.f32.mxu0 0.0
          %770 = vmatmul.mubr.f32.gmra.mrb[0].mxu0 %v680
          %v771 = vpop.f32.mrb[0].mxu0
          %v772 = vadd.f32 %v703, %v771
          %v773 = vpop.f32.mrb[0].mxu0
          %774 = vmatprep.mubr.f32.mxu0 0.0
          %775 = vmatmul.mubr.f32.gmra.mrb[0].mxu0 %v681
          %v776 = vpop.f32.mrb[0].mxu0
          %v777 = vadd.f32 %v703, %v776
          %v778 = vpop.f32.mrb[0].mxu0
          %779 = vdwg.mxu0
          %780 = vst [vmem:[%s324] sm:$0xff] %v772
          %781 = vst [vmem:[%s324 + $0x8] sm:$0xff] %v777
        $region60: #{tpu_custom_call.1} parent=39 // pred_fallthru
          _
        %s782 = sand.u32 %s155, 1
        %s783 = scalar_lea.sflag [#allocation5], %s782
        %s784 = sand.u32 %s155, 1
        %s785 = smul.addr %s784, 16
        %s786 = scalar_lea.vmem [#allocation9], %s785
        // Predicated region
        $region61: #{tpu_custom_call.1} parent=39 // pred_check
          %p787 = pneg %p165
        $region62: #{tpu_custom_call.1} parent=39 // pred_check_branch
          %789 = sbr.rel (%p787) target = $region64
        $region63: #{tpu_custom_call.1} parent=39 // pred_region
          %s790 = smul.u32 2, %s27
          %s792 = ssub.s32 256, 256
          %793 = vsyncadd %s783, %s792
          %s794 = smul.addr %s790, 128
          %s795 = scalar_lea.hbm %s5, %s794
          %s796 = sshll.u32 %s786, 4
          %s797 = int_to_ptr.vmem [resolvable:$true] %s796
          %802 = dma.vmem_to_hbm [thread:$0]  %s797, 256, %s795, %s783, 128, 128, 8
        $region64: #{tpu_custom_call.1} parent=39 // pred_fallthru
          _
      $region40: #{tpu_custom_call.1} parent=5 // pred_fallthru
        _
      %p803 = scmp.le.s32.totalorder 2, %s18
      // Predicated region
      $region65: #{tpu_custom_call.1} parent=5 // pred_check
        %p804 = pneg %p803
      $region66: #{tpu_custom_call.1} parent=5 // pred_check_branch
        %806 = sbr.rel (%p804) target = $region68
      $region67: #{tpu_custom_call.1} parent=5 // pred_region
        %s807 = ssub.s32 %s18, 2
        // Predicated region
        $region69: #{tpu_custom_call.1} parent=67 // pred_check
          %p808 = pneg %p171
        $region70: #{tpu_custom_call.1} parent=67 // pred_check_branch
          %810 = sbr.rel (%p808) target = $region72
        $region71: #{tpu_custom_call.1} parent=67 // pred_region
          %s811 = sand.u32 %s156, 1
          %s812 = scalar_lea.sflag [#allocation5], %s811
          %s813 = sand.u32 %s156, 1
          %s814 = smul.addr %s813, 16
          %s815 = scalar_lea.vmem [#allocation9], %s814
          %816 = dma.done %s812, 256
        $region72: #{tpu_custom_call.1} parent=67 // pred_fallthru
          _
      $region68: #{tpu_custom_call.1} parent=5 // pred_fallthru
        _
    $region6: #{tpu_custom_call.1} parent=1 // loop_footer
      %s22 = sadd.s32 1, %s18
    $region7: #{tpu_custom_call.1} parent=1 // loop_footer_branch
      %17 = sbr.rel target = $region3
    $region8: #{tpu_custom_call.1} parent=1 // loop_exit
      _
    %817 = vsyncpa [#allocation4], 1
    %s818 = scalar_lea.sflag [#allocation4], 1
    %819 = vsyncpa %s818, 1
    %820 = vsyncpa [#allocation7], 1
    %821 = vsyncpa [#allocation5], 1
    %s822 = scalar_lea.sflag [#allocation5], 1
    %823 = vsyncpa %s822, 1

</llo_original>
